<compile_context>
chip_gen: v7x
topology: tpu7x:2x2x1
jax: 0.10.0
libtpu: 0.0.40
codegen_flags: <defaults>
</compile_context>

<pallas_src>
import jax
import jax.numpy as jnp
from jax.experimental import pallas as pl
from jax.experimental.pallas import tpu as pltpu


def _round_up(v, m):
    return ((v + m - 1) // m) * m


def nerf_kernel(x_ref,
                w1_ref, b1_ref,
                w2_ref, b2_ref,
                w3_ref, b3_ref,
                w4_ref, b4_ref,
                o_ref):
    """Whole-MLP hot path: 4 bf16 MXU matmuls + f32 VPU bias/ReLU per row tile."""
    x = x_ref[...]                                                   # bf16 [tm, K]

    # Layer 1: bf16 x bf16 -> f32 accumulate; bias/ReLU in f32, fused bf16 cast.
    h = jnp.dot(x, w1_ref[...], preferred_element_type=jnp.float32)
    h = jnp.maximum(h + b1_ref[...], 0.0).astype(jnp.bfloat16)

    # Layer 2.
    h = jnp.dot(h, w2_ref[...], preferred_element_type=jnp.float32)
    h = jnp.maximum(h + b2_ref[...], 0.0).astype(jnp.bfloat16)

    # Layer 3.
    h = jnp.dot(h, w3_ref[...], preferred_element_type=jnp.float32)
    h = jnp.maximum(h + b3_ref[...], 0.0).astype(jnp.bfloat16)

    # Layer 4: bf16 matmul, f32 bias, narrow (4-wide) f32 store -> only real
    # bytes hit HBM.
    out = jnp.dot(h, w4_ref[...], preferred_element_type=jnp.float32) + b4_ref[...]
    o_ref[...] = out.astype(o_ref.dtype)


def nerf_forward(x, params, *, tile_m=512):
    """Run the NERF MLP. x: [N, input_dim]. Returns [N, 4] float32.

    tile_m is a tunable (512 default; 1024/2048 also fit VMEM easily on every
    generation).  It is clamped to round_up(N, 128) so small batches do no
    padding-row work; large batches keep multiple grid steps so the
    "parallel" grid axis can be sharded across v7x's two TensorCores.
    Weights stay fully resident in VMEM (~0.3 MB).
    """
    (w1, b1), (w2, b2), (w3, b3), (w4, b4) = params
    n, input_dim = x.shape
    hidden = w1.shape[1]
    out_dim = w4.shape[1]

    tile = min(tile_m, _round_up(n, 128))
    n_pad = _round_up(n, tile)

    # torch does x.float(); we then feed the MXU bf16 operands (f32 accumulate).
    x_p = x.astype(jnp.float32).astype(jnp.bfloat16)
    if n_pad != n:
        x_p = jnp.pad(x_p, ((0, n_pad - n), (0, 0)))

    w1_p = w1.astype(jnp.bfloat16)
    w2_p = w2.astype(jnp.bfloat16)
    w3_p = w3.astype(jnp.bfloat16)
    w4_p = w4.astype(jnp.bfloat16)
    b1_p = b1.astype(jnp.float32)
    b2_p = b2.astype(jnp.float32)
    b3_p = b3.astype(jnp.float32)
    b4_p = b4.astype(jnp.float32)

    grid = (n_pad // tile,)

    # Weights/biases are small; each is one full block with a constant
    # index_map => resident in VMEM across all grid steps.
    def full(shape):
        return pl.BlockSpec(shape, lambda i: (0, 0))

    in_specs = [
        pl.BlockSpec((tile, input_dim), lambda i: (i, 0)),   # x row tile (bf16)
        full((input_dim, hidden)), full((1, hidden)),        # layer 1
        full((hidden, hidden)),    full((1, hidden)),        # layer 2
        full((hidden, hidden)),    full((1, hidden)),        # layer 3
        full((hidden, out_dim)),   full((1, out_dim)),       # layer 4
    ]
    out_spec = pl.BlockSpec((tile, out_dim), lambda i: (i, 0))

    flops = 2 * n_pad * (input_dim * hidden + 2 * hidden * hidden + hidden * out_dim)
    bytes_accessed = (
        n_pad * input_dim * 2                                     # x (bf16)
        + (input_dim * hidden + 2 * hidden * hidden + hidden * out_dim) * 2
        + (3 * hidden + out_dim) * 4                              # biases (f32)
        + n_pad * out_dim * 4                                     # output (f32)
    )

    out_padded = pl.pallas_call(
        nerf_kernel,
        out_shape=jax.ShapeDtypeStruct((n_pad, out_dim), jnp.float32),
        grid=grid,
        in_specs=in_specs,
        out_specs=out_spec,
        compiler_params=pltpu.CompilerParams(
            dimension_semantics=("parallel",),
        ),
        cost_estimate=pl.CostEstimate(
            flops=flops, transcendentals=0, bytes_accessed=bytes_accessed),
    )(x_p, w1_p, b1_p, w2_p, b2_p, w3_p, b3_p, w4_p, b4_p)

    return out_padded[:n] if n_pad != n else out_padded


def init_params(key, input_dim, hidden=256, out_dim=4):
    """Deterministic synthetic parameters (shapes match the PyTorch module)."""
    dims = [(input_dim, hidden), (hidden, hidden), (hidden, hidden), (hidden, out_dim)]
    params = []
    for (fan_in, fan_out) in dims:
        key, kw, kb = jax.random.split(key, 3)
        bound = 1.0 / jnp.sqrt(fan_in)
        w = jax.random.uniform(kw, (fan_in, fan_out), jnp.float32, -bound, bound)
        b = jax.random.uniform(kb, (1, fan_out), jnp.float32, -bound, bound)
        params.append((w, b))
    return params


def nerf_reference(x, params):
    """Plain-JAX f32 reference (mirrors the PyTorch module) for correctness."""
    (w1, b1), (w2, b2), (w3, b3), (w4, b4) = params
    x = x.astype(jnp.float32)
    h = jnp.maximum(x @ w1 + b1, 0.0)
    h = jnp.maximum(h @ w2 + b2, 0.0)
    h = jnp.maximum(h @ w3 + b3, 0.0)
    return h @ w4 + b4


if __name__ == "__main__":
    # input_dim = 2 * 3 * encoding_functions, with encoding_functions = 6 -> 36
    encoding_functions = 6
    input_dim = 2 * 3 * encoding_functions   # 36
    n = 128                                  # number of sample points

    key = jax.random.PRNGKey(0)
    key, kx = jax.random.split(key)
    x = jax.random.normal(kx, (n, input_dim), jnp.float32)
    params = init_params(key, input_dim)

    out = nerf_forward(x, params)
    out = jax.block_until_ready(out)

    ref = nerf_reference(x, params)
    assert out.shape == (n, 4)
    # bf16 operands on all layers (f32 accumulation) => relaxed tolerance.
    assert jnp.allclose(out, ref, atol=3e-2, rtol=3e-2), "mismatch vs reference"

    print("KERNEL_OK")
</pallas_src>

<mosaic_0001>
module attributes {stable_mosaic.version = 11 : i64} {
  func.func @nerf_kernel(%arg0: i32, %arg1: memref<128x36xbf16, #tpu.memory_space<vmem>>, %arg2: memref<36x256xbf16, #tpu.memory_space<vmem>>, %arg3: memref<1x256xf32, #tpu.memory_space<vmem>>, %arg4: memref<256x256xbf16, #tpu.memory_space<vmem>>, %arg5: memref<1x256xf32, #tpu.memory_space<vmem>>, %arg6: memref<256x256xbf16, #tpu.memory_space<vmem>>, %arg7: memref<1x256xf32, #tpu.memory_space<vmem>>, %arg8: memref<256x4xbf16, #tpu.memory_space<vmem>>, %arg9: memref<1x4xf32, #tpu.memory_space<vmem>>, %arg10: memref<128x4xf32, #tpu.memory_space<vmem>>) attributes {dimension_semantics = [#tpu.dimension_semantics<parallel>], iteration_bounds = array<i64: 1>, scalar_prefetch = 0 : i64, scratch_operands = 0 : i64, tpu.core_type = #tpu.core_type<tc>, window_params = [{transform_indices = @transform_0, window_bounds = array<i64: 128, 36>}, {pipeline_mode = #tpu.pipeline_mode<synchronous>, transform_indices = @transform_1, window_bounds = array<i64: 36, 256>}, {pipeline_mode = #tpu.pipeline_mode<synchronous>, transform_indices = @transform_2, window_bounds = array<i64: 1, 256>}, {pipeline_mode = #tpu.pipeline_mode<synchronous>, transform_indices = @transform_3, window_bounds = array<i64: 256, 256>}, {pipeline_mode = #tpu.pipeline_mode<synchronous>, transform_indices = @transform_4, window_bounds = array<i64: 1, 256>}, {pipeline_mode = #tpu.pipeline_mode<synchronous>, transform_indices = @transform_5, window_bounds = array<i64: 256, 256>}, {pipeline_mode = #tpu.pipeline_mode<synchronous>, transform_indices = @transform_6, window_bounds = array<i64: 1, 256>}, {pipeline_mode = #tpu.pipeline_mode<synchronous>, transform_indices = @transform_7, window_bounds = array<i64: 256, 4>}, {pipeline_mode = #tpu.pipeline_mode<synchronous>, transform_indices = @transform_8, window_bounds = array<i64: 1, 4>}, {transform_indices = @transform_9, window_bounds = array<i64: 128, 4>}]} {
    %c0 = arith.constant 0 : index
    %c0_0 = arith.constant 0 : index
    %0 = vector.load %arg1[%c0, %c0_0] : memref<128x36xbf16, #tpu.memory_space<vmem>>, vector<128x36xbf16>
    %c0_1 = arith.constant 0 : index
    %c0_2 = arith.constant 0 : index
    %1 = vector.load %arg2[%c0_1, %c0_2] : memref<36x256xbf16, #tpu.memory_space<vmem>>, vector<36x256xbf16>
    %cst = arith.constant dense<0.000000e+00> : vector<128x256xf32>
    %2 = tpu.matmul %0, %1, %cst {dimension_numbers = #tpu.dot_dimension_numbers<[1], [0], [0], [1], [0, 0, 1, 1], [], []>} : vector<128x36xbf16>, vector<36x256xbf16>, vector<128x256xf32> -> vector<128x256xf32>
    %c0_3 = arith.constant 0 : index
    %c0_4 = arith.constant 0 : index
    %3 = vector.load %arg3[%c0_3, %c0_4] : memref<1x256xf32, #tpu.memory_space<vmem>>, vector<1x256xf32>
    %4 = vector.broadcast %3 : vector<1x256xf32> to vector<128x256xf32>
    %5 = arith.addf %2, %4 : vector<128x256xf32>
    %cst_5 = arith.constant 0.000000e+00 : f32
    %6 = vector.broadcast %cst_5 : f32 to vector<128x256xf32>
    %7 = arith.maximumf %5, %6 : vector<128x256xf32>
    %8 = arith.truncf %7 : vector<128x256xf32> to vector<128x256xbf16>
    %c0_6 = arith.constant 0 : index
    %c0_7 = arith.constant 0 : index
    %9 = vector.load %arg4[%c0_6, %c0_7] : memref<256x256xbf16, #tpu.memory_space<vmem>>, vector<256x256xbf16>
    %cst_8 = arith.constant dense<0.000000e+00> : vector<128x256xf32>
    %10 = tpu.matmul %8, %9, %cst_8 {dimension_numbers = #tpu.dot_dimension_numbers<[1], [0], [0], [1], [0, 0, 1, 1], [], []>} : vector<128x256xbf16>, vector<256x256xbf16>, vector<128x256xf32> -> vector<128x256xf32>
    %c0_9 = arith.constant 0 : index
    %c0_10 = arith.constant 0 : index
    %11 = vector.load %arg5[%c0_9, %c0_10] : memref<1x256xf32, #tpu.memory_space<vmem>>, vector<1x256xf32>
    %12 = vector.broadcast %11 : vector<1x256xf32> to vector<128x256xf32>
    %13 = arith.addf %10, %12 : vector<128x256xf32>
    %cst_11 = arith.constant 0.000000e+00 : f32
    %14 = vector.broadcast %cst_11 : f32 to vector<128x256xf32>
    %15 = arith.maximumf %13, %14 : vector<128x256xf32>
    %16 = arith.truncf %15 : vector<128x256xf32> to vector<128x256xbf16>
    %c0_12 = arith.constant 0 : index
    %c0_13 = arith.constant 0 : index
    %17 = vector.load %arg6[%c0_12, %c0_13] : memref<256x256xbf16, #tpu.memory_space<vmem>>, vector<256x256xbf16>
    %cst_14 = arith.constant dense<0.000000e+00> : vector<128x256xf32>
    %18 = tpu.matmul %16, %17, %cst_14 {dimension_numbers = #tpu.dot_dimension_numbers<[1], [0], [0], [1], [0, 0, 1, 1], [], []>} : vector<128x256xbf16>, vector<256x256xbf16>, vector<128x256xf32> -> vector<128x256xf32>
    %c0_15 = arith.constant 0 : index
    %c0_16 = arith.constant 0 : index
    %19 = vector.load %arg7[%c0_15, %c0_16] : memref<1x256xf32, #tpu.memory_space<vmem>>, vector<1x256xf32>
    %20 = vector.broadcast %19 : vector<1x256xf32> to vector<128x256xf32>
    %21 = arith.addf %18, %20 : vector<128x256xf32>
    %cst_17 = arith.constant 0.000000e+00 : f32
    %22 = vector.broadcast %cst_17 : f32 to vector<128x256xf32>
    %23 = arith.maximumf %21, %22 : vector<128x256xf32>
    %24 = arith.truncf %23 : vector<128x256xf32> to vector<128x256xbf16>
    %c0_18 = arith.constant 0 : index
    %c0_19 = arith.constant 0 : index
    %25 = vector.load %arg8[%c0_18, %c0_19] : memref<256x4xbf16, #tpu.memory_space<vmem>>, vector<256x4xbf16>
    %cst_20 = arith.constant dense<0.000000e+00> : vector<128x4xf32>
    %26 = tpu.matmul %24, %25, %cst_20 {dimension_numbers = #tpu.dot_dimension_numbers<[1], [0], [0], [1], [0, 0, 1, 1], [], []>} : vector<128x256xbf16>, vector<256x4xbf16>, vector<128x4xf32> -> vector<128x4xf32>
    %c0_21 = arith.constant 0 : index
    %c0_22 = arith.constant 0 : index
    %27 = vector.load %arg9[%c0_21, %c0_22] : memref<1x4xf32, #tpu.memory_space<vmem>>, vector<1x4xf32>
    %28 = vector.broadcast %27 : vector<1x4xf32> to vector<128x4xf32>
    %29 = arith.addf %26, %28 : vector<128x4xf32>
    %c0_23 = arith.constant 0 : index
    %c0_24 = arith.constant 0 : index
    %30 = vector.load %arg10[%c0_23, %c0_24] : memref<128x4xf32, #tpu.memory_space<vmem>>, vector<128x4xf32>
    tpu.vector_store %arg10[%c0_23, %c0_24], %29 {strides = array<i32>} : memref<128x4xf32, #tpu.memory_space<vmem>>, vector<128x4xf32>,
    return
  }
  func.func @transform_0(%arg0: i32) -> (i32, i32) {
    %c0_i32 = arith.constant 0 : i32
    %c0_i32_0 = arith.constant 0 : i32
    return %arg0, %c0_i32 : i32, i32
  }
  func.func @transform_1(%arg0: i32) -> (i32, i32) {
    %c0_i32 = arith.constant 0 : i32
    %c0_i32_0 = arith.constant 0 : i32
    %c0_i32_1 = arith.constant 0 : i32
    return %c0_i32, %c0_i32_0 : i32, i32
  }
  func.func @transform_2(%arg0: i32) -> (i32, i32) {
    %c0_i32 = arith.constant 0 : i32
    %c0_i32_0 = arith.constant 0 : i32
    %c0_i32_1 = arith.constant 0 : i32
    return %c0_i32, %c0_i32_0 : i32, i32
  }
  func.func @transform_3(%arg0: i32) -> (i32, i32) {
    %c0_i32 = arith.constant 0 : i32
    %c0_i32_0 = arith.constant 0 : i32
    %c0_i32_1 = arith.constant 0 : i32
    return %c0_i32, %c0_i32_0 : i32, i32
  }
  func.func @transform_4(%arg0: i32) -> (i32, i32) {
    %c0_i32 = arith.constant 0 : i32
    %c0_i32_0 = arith.constant 0 : i32
    %c0_i32_1 = arith.constant 0 : i32
    return %c0_i32, %c0_i32_0 : i32, i32
  }
  func.func @transform_5(%arg0: i32) -> (i32, i32) {
    %c0_i32 = arith.constant 0 : i32
    %c0_i32_0 = arith.constant 0 : i32
    %c0_i32_1 = arith.constant 0 : i32
    return %c0_i32, %c0_i32_0 : i32, i32
  }
  func.func @transform_6(%arg0: i32) -> (i32, i32) {
    %c0_i32 = arith.constant 0 : i32
    %c0_i32_0 = arith.constant 0 : i32
    %c0_i32_1 = arith.constant 0 : i32
    return %c0_i32, %c0_i32_0 : i32, i32
  }
  func.func @transform_7(%arg0: i32) -> (i32, i32) {
    %c0_i32 = arith.constant 0 : i32
    %c0_i32_0 = arith.constant 0 : i32
    %c0_i32_1 = arith.constant 0 : i32
    return %c0_i32, %c0_i32_0 : i32, i32
  }
  func.func @transform_8(%arg0: i32) -> (i32, i32) {
    %c0_i32 = arith.constant 0 : i32
    %c0_i32_0 = arith.constant 0 : i32
    %c0_i32_1 = arith.constant 0 : i32
    return %c0_i32, %c0_i32_0 : i32, i32
  }
  func.func @transform_9(%arg0: i32) -> (i32, i32) {
    %c0_i32 = arith.constant 0 : i32
    %c0_i32_0 = arith.constant 0 : i32
    return %arg0, %c0_i32 : i32, i32
  }
}

</mosaic_0001>

<llo_original>
// kernel: tpu_custom_call.1
$region0: #{tpu_custom_call.1}
  #allocation0 [shape = 'u32[]', space=smem, size = 0x4, offset = 0x4, fixed_abs, tag = 'smem constant byte address 0x4 - core index']
  #allocation1 [shape = 'u32[144,128]{1,0:T(1,128)}', space=vmem, size = 0x12000, scoped, tag = 'internal scratch']
  %s0 = inlined_call_operand.vmem [shape: bf16[128,36], index: 0, kind: input, shape index: {}]
  %s1 = inlined_call_operand.vmem [shape: bf16[36,256], index: 1, kind: input, shape index: {}]
  %s2 = inlined_call_operand.vmem [shape: f32[1,256], index: 2, kind: input, shape index: {}]
  %s3 = inlined_call_operand.hbm [shape: bf16[256,256], index: 3, kind: input, shape index: {}]
  %s4 = inlined_call_operand.vmem [shape: f32[1,256], index: 4, kind: input, shape index: {}]
  %s5 = inlined_call_operand.hbm [shape: bf16[256,256], index: 5, kind: input, shape index: {}]
  %s6 = inlined_call_operand.vmem [shape: f32[1,256], index: 6, kind: input, shape index: {}]
  %s7 = inlined_call_operand.vmem [shape: bf16[256,4], index: 7, kind: input, shape index: {}]
  %s8 = inlined_call_operand.vmem [shape: f32[1,4], index: 8, kind: input, shape index: {}]
  %s9 = inlined_call_operand.vmem [shape: f32[128,4], index: 9, kind: output, shape index: {}]
  %s10 = sld [smem:[#allocation0]]
  $region54: #{tpu_custom_call.1} parent=0
    _
  %s12 = ssub.s32 1, %s10
  %s13 = scalar_select 0, %s12, %s10
  $region1: #{tpu_custom_call.1} parent=0
    #allocation2 [shape = 'u8[131072]{0}', space=vmem, size = 0x20000, scoped, tag = 'input window, operand 3, single buffered']
    #allocation3 [shape = 's32[1]{0}', space=sflag, size = 0x4, scoped, tag = 'scoped memory for tpu_custom_call.1']
    #allocation4 [shape = 'u8[131072]{0}', space=vmem, size = 0x20000, scoped, tag = 'input window, operand 5, single buffered']
    #allocation5 [shape = 's32[1]{0}', space=sflag, size = 0x4, scoped, tag = 'scoped memory for tpu_custom_call.1']
    %14 = vsyncpa [#allocation3], 0
    %15 = vsyncpa [#allocation5], 0
    // Predicated region
    $region2: #{tpu_custom_call.1} parent=1 // pred_check
      _
    $region3: #{tpu_custom_call.1} parent=1 // pred_check_branch
      %17 = sbr.rel (0) target = $region5
    $region4: #{tpu_custom_call.1} parent=1 // pred_region
      _
    $region5: #{tpu_custom_call.1} parent=1 // pred_fallthru
      _
    // Predicated region
    $region6: #{tpu_custom_call.1} parent=1 // pred_check
      _
    $region7: #{tpu_custom_call.1} parent=1 // pred_check_branch
      %19 = sbr.rel (0) target = $region9
    $region8: #{tpu_custom_call.1} parent=1 // pred_region
      _
    $region9: #{tpu_custom_call.1} parent=1 // pred_fallthru
      _
    // Predicated region
    $region10: #{tpu_custom_call.1} parent=1 // pred_check
      _
    $region11: #{tpu_custom_call.1} parent=1 // pred_check_branch
      %21 = sbr.rel (0) target = $region13
    $region12: #{tpu_custom_call.1} parent=1 // pred_region
      _
    $region13: #{tpu_custom_call.1} parent=1 // pred_fallthru
      _
    // Predicated region
    $region14: #{tpu_custom_call.1} parent=1 // pred_check
      _
    $region15: #{tpu_custom_call.1} parent=1 // pred_check_branch
      %23 = sbr.rel (0) target = $region17
    $region16: #{tpu_custom_call.1} parent=1 // pred_region
      %s25 = ssub.s32 4096, 4096
      %26 = vsyncadd [#allocation3], %s25
      %s27 = sshll.u32 [#allocation2], 4
      %s28 = int_to_ptr.vmem [resolvable:$true] %s27
      %33 = dma.hbm_to_vmem [thread:$0]  %s3, 4096, %s28, [#allocation3], 128, 128, 8
    $region17: #{tpu_custom_call.1} parent=1 // pred_fallthru
      _
    // Predicated region
    $region18: #{tpu_custom_call.1} parent=1 // pred_check
      _
    $region19: #{tpu_custom_call.1} parent=1 // pred_check_branch
      %35 = sbr.rel (0) target = $region21
    $region20: #{tpu_custom_call.1} parent=1 // pred_region
      _
    $region21: #{tpu_custom_call.1} parent=1 // pred_fallthru
      _
    // Predicated region
    $region22: #{tpu_custom_call.1} parent=1 // pred_check
      _
    $region23: #{tpu_custom_call.1} parent=1 // pred_check_branch
      %37 = sbr.rel (0) target = $region25
    $region24: #{tpu_custom_call.1} parent=1 // pred_region
      %s39 = ssub.s32 4096, 4096
      %40 = vsyncadd [#allocation5], %s39
      %s41 = sshll.u32 [#allocation4], 4
      %s42 = int_to_ptr.vmem [resolvable:$true] %s41
      %47 = dma.hbm_to_vmem [thread:$0]  %s5, 4096, %s42, [#allocation5], 128, 128, 8
    $region25: #{tpu_custom_call.1} parent=1 // pred_fallthru
      _
    // Predicated region
    $region26: #{tpu_custom_call.1} parent=1 // pred_check
      _
    $region27: #{tpu_custom_call.1} parent=1 // pred_check_branch
      %49 = sbr.rel (0) target = $region29
    $region28: #{tpu_custom_call.1} parent=1 // pred_region
      _
    $region29: #{tpu_custom_call.1} parent=1 // pred_fallthru
      _
    // Predicated region
    $region30: #{tpu_custom_call.1} parent=1 // pred_check
      _
    $region31: #{tpu_custom_call.1} parent=1 // pred_check_branch
      %51 = sbr.rel (0) target = $region33
    $region32: #{tpu_custom_call.1} parent=1 // pred_region
      _
    $region33: #{tpu_custom_call.1} parent=1 // pred_fallthru
      _
    // Predicated region
    $region34: #{tpu_custom_call.1} parent=1 // pred_check
      _
    $region35: #{tpu_custom_call.1} parent=1 // pred_check_branch
      %53 = sbr.rel (0) target = $region37
    $region36: #{tpu_custom_call.1} parent=1 // pred_region
      _
    $region37: #{tpu_custom_call.1} parent=1 // pred_fallthru
      _
    // Predicated region
    $region38: #{tpu_custom_call.1} parent=1 // pred_check
      _
    $region39: #{tpu_custom_call.1} parent=1 // pred_check_branch
      %55 = sbr.rel (0) target = $region41
    $region40: #{tpu_custom_call.1} parent=1 // pred_region
      %56 = dma.done [#allocation3], 4096
    $region41: #{tpu_custom_call.1} parent=1 // pred_fallthru
      _
    // Predicated region
    $region42: #{tpu_custom_call.1} parent=1 // pred_check
      _
    $region43: #{tpu_custom_call.1} parent=1 // pred_check_branch
      %58 = sbr.rel (0) target = $region45
    $region44: #{tpu_custom_call.1} parent=1 // pred_region
      %59 = dma.done [#allocation5], 4096
    $region45: #{tpu_custom_call.1} parent=1 // pred_fallthru
      _
    %v61 = vld [vmem:[%s0] sm:$0xf]
    %v62 = vld [vmem:[%s0 + $0x4] sm:$0xf]
    %v63 = vld [vmem:[%s0 + $0x8] sm:$0xf]
    %v64 = vld [vmem:[%s0 + $0xc] sm:$0xf]
    %v65 = vld [vmem:[%s0 + $0x10] sm:$0xf]
    %v66 = vld [vmem:[%s0 + $0x14] sm:$0xf]
    %v67 = vld [vmem:[%s0 + $0x18] sm:$0xf]
    %v68 = vld [vmem:[%s0 + $0x1c] sm:$0xf]
    %v69 = vld [vmem:[%s0 + $0x20] sm:$0xf]
    %v70 = vld [vmem:[%s0 + $0x24] sm:$0xf]
    %v71 = vld [vmem:[%s0 + $0x28] sm:$0xf]
    %v72 = vld [vmem:[%s0 + $0x2c] sm:$0xf]
    %v73 = vld [vmem:[%s0 + $0x30] sm:$0xf]
    %v74 = vld [vmem:[%s0 + $0x34] sm:$0xf]
    %v75 = vld [vmem:[%s0 + $0x38] sm:$0xf]
    %v76 = vld [vmem:[%s0 + $0x3c] sm:$0xf]
    %v77 = vld [vmem:[%s1] sm:$0xff]
    %v78 = vld [vmem:[%s1 + $0x8] sm:$0xff]
    %v79 = vld [vmem:[%s1 + $0x10] sm:$0xff]
    %v80 = vld [vmem:[%s1 + $0x18] sm:$0xff]
    %v81 = vld [vmem:[%s1 + $0x20] sm:$0x33]
    %v82 = vld [vmem:[%s2] sm:$0x3]
    %v84 = vlaneseq
    %v85 = vshrl.u32 %v84, 7
    %v86 = vsub.s32 0, %v85
    %v87 = vrot.slane %v82, %v86
    %v88 = vlaneseq
    %v89 = vshrl.u32 %v88, 7
    %v90 = vsub.s32 1, %v89
    %v91 = vrot.slane %v82, %v90
    %v110 = vunpack.c.l.b16 %v61
    %v111 = vunpack.c.l.b16 %v62
    %v112 = vunpack.c.l.b16 %v63
    %v113 = vunpack.c.l.b16 %v64
    %v114 = vunpack.c.l.b16 %v65
    %v115 = vunpack.c.l.b16 %v66
    %v116 = vunpack.c.l.b16 %v67
    %v117 = vunpack.c.l.b16 %v68
    %v118 = vunpack.c.l.b16 %v69
    %v119 = vunpack.c.l.b16 %v70
    %v120 = vunpack.c.l.b16 %v71
    %v121 = vunpack.c.l.b16 %v72
    %v122 = vunpack.c.l.b16 %v73
    %v123 = vunpack.c.l.b16 %v74
    %v124 = vunpack.c.l.b16 %v75
    %v125 = vunpack.c.l.b16 %v76
    %v126 = vpack.c.b16 %v111, %v110
    %v127 = vpack.c.b16 %v113, %v112
    %v128 = vpack.c.b16 %v115, %v114
    %v129 = vpack.c.b16 %v117, %v116
    %v130 = vpack.c.b16 %v119, %v118
    %v131 = vpack.c.b16 %v121, %v120
    %v132 = vpack.c.b16 %v123, %v122
    %v133 = vpack.c.b16 %v125, %v124
    %v139 = vunpack.c.l.b16 %v77
    %v140 = vunpack.c.h.b16 %v77
    %v141 = vunpack.c.l.b16 %v78
    %v142 = vunpack.c.h.b16 %v78
    %v143 = vunpack.c.l.b16 %v79
    %v144 = vunpack.c.h.b16 %v79
    %v145 = vunpack.c.l.b16 %v80
    %v146 = vunpack.c.h.b16 %v80
    %v147 = vunpack.c.l.b16 %v81
    %v148 = vunpack.c.h.b16 %v81
    %v149 = vpack.c.b16 %v141, %v139
    %v150 = vpack.c.b16 %v142, %v140
    %v151 = vpack.c.b16 %v145, %v143
    %v152 = vpack.c.b16 %v146, %v144
    %v153 = vpack.c.b16 %v147, %v147
    %v154 = vpack.c.b16 %v148, %v148
    %vm159 = vcmask 293888
    %v161 = vsel %vm159, %v126, 0
    %v164 = vsel %vm159, %v127, 0
    %v167 = vsel %vm159, %v128, 0
    %v170 = vsel %vm159, %v129, 0
    %v173 = vsel %vm159, %v130, 0
    %v176 = vsel %vm159, %v131, 0
    %v179 = vsel %vm159, %v132, 0
    %v182 = vsel %vm159, %v133, 0
    %vm184 = vcmask 1041408
    %v186 = vsel %vm184, %v153, 0
    %v189 = vsel %vm184, %v154, 0
    %191 = vmatprep.subr.bf16.mxu0 %v150
    %192 = vmatpush1.bf16.msra.mxu0 %v149
    %193 = vmatprep.subr.bf16.mxu0 %v152
    %194 = vmatpush1.bf16.msra.mxu0 %v151
    %195 = vmatprep.subr.bf16.mxu0 %v189
    %196 = vmatpush1.bf16.msra.mxu0 %v186
    %197 = vmatprep.subr.bf16.mxu0 0
    %198 = vmatpush1.bf16.msra.mxu0 0
    %199 = vmatprep.subr.bf16.mxu0 0
    %200 = vmatpush1.bf16.msra.mxu0 0
    %201 = vmatprep.subr.bf16.mxu0 0
    %202 = vmatpush1.bf16.msra.mxu0 0
    %203 = vmatprep.subr.bf16.mxu0 0
    %204 = vmatpush1.bf16.msra.mxu0 0
    %205 = vmatprep.subr.bf16.mxu0 0
    %206 = vmatpush1.bf16.msra.mxu0 0
    %207 = vmatprep.subr.bf16.mxu0 0
    %208 = vmatpush1.bf16.msra.mxu0 0
    %209 = vmatprep.subr.bf16.mxu0 0
    %210 = vmatpush1.bf16.msra.mxu0 0
    %211 = vmatprep.subr.bf16.mxu0 0
    %212 = vmatpush1.bf16.msra.mxu0 0
    %213 = vmatprep.subr.bf16.mxu0 0
    %214 = vmatpush1.bf16.msra.mxu0 0
    %215 = vmatprep.subr.bf16.mxu0 0
    %216 = vmatpush1.bf16.msra.mxu0 0
    %217 = vmatprep.subr.bf16.mxu0 0
    %218 = vmatpush1.bf16.msra.mxu0 0
    %219 = vmatprep.subr.bf16.mxu0 0
    %220 = vmatpush1.bf16.msra.mxu0 0
    %221 = vmatprep.subr.bf16.mxu0 0
    %222 = vmatpush1.bf16.msra.mxu0 0
    %223 = vmatprep.mubr.bf16.mxu0 0
    %224 = vmatmul.mubr.bf16.gmra.mrb[0].mxu0 %v161
    %v225 = vpop.f32.mrb[0].mxu0
    %v226 = vadd.f32 %v87, %v225
    %v227 = vpop.f32.mrb[0].mxu0
    %v228 = vadd.f32 %v91, %v227
    %v229 = vpop.f32.mrb[0].mxu0
    %v230 = vadd.f32 %v87, %v229
    %v231 = vpop.f32.mrb[0].mxu0
    %v232 = vadd.f32 %v91, %v231
    %233 = vmatprep.mubr.bf16.mxu0 0
    %234 = vmatmul.mubr.bf16.gmra.mrb[0].mxu0 %v164
    %v235 = vpop.f32.mrb[0].mxu0
    %v236 = vadd.f32 %v87, %v235
    %v237 = vpop.f32.mrb[0].mxu0
    %v238 = vadd.f32 %v91, %v237
    %v239 = vpop.f32.mrb[0].mxu0
    %v240 = vadd.f32 %v87, %v239
    %v241 = vpop.f32.mrb[0].mxu0
    %v242 = vadd.f32 %v91, %v241
    %243 = vmatprep.mubr.bf16.mxu0 0
    %244 = vmatmul.mubr.bf16.gmra.mrb[0].mxu0 %v167
    %v245 = vpop.f32.mrb[0].mxu0
    %v246 = vadd.f32 %v87, %v245
    %v247 = vpop.f32.mrb[0].mxu0
    %v248 = vadd.f32 %v91, %v247
    %v249 = vpop.f32.mrb[0].mxu0
    %v250 = vadd.f32 %v87, %v249
    %v251 = vpop.f32.mrb[0].mxu0
    %v252 = vadd.f32 %v91, %v251
    %253 = vmatprep.mubr.bf16.mxu0 0
    %254 = vmatmul.mubr.bf16.gmra.mrb[0].mxu0 %v170
    %v255 = vpop.f32.mrb[0].mxu0
    %v256 = vadd.f32 %v87, %v255
    %v257 = vpop.f32.mrb[0].mxu0
    %v258 = vadd.f32 %v91, %v257
    %v259 = vpop.f32.mrb[0].mxu0
    %v260 = vadd.f32 %v87, %v259
    %v261 = vpop.f32.mrb[0].mxu0
    %v262 = vadd.f32 %v91, %v261
    %263 = vmatprep.mubr.bf16.mxu0 0
    %264 = vmatmul.mubr.bf16.gmra.mrb[0].mxu0 %v173
    %v265 = vpop.f32.mrb[0].mxu0
    %v266 = vadd.f32 %v87, %v265
    %v267 = vpop.f32.mrb[0].mxu0
    %v268 = vadd.f32 %v91, %v267
    %v269 = vpop.f32.mrb[0].mxu0
    %v270 = vadd.f32 %v87, %v269
    %v271 = vpop.f32.mrb[0].mxu0
    %v272 = vadd.f32 %v91, %v271
    %273 = vmatprep.mubr.bf16.mxu0 0
    %274 = vmatmul.mubr.bf16.gmra.mrb[0].mxu0 %v176
    %v275 = vpop.f32.mrb[0].mxu0
    %v276 = vadd.f32 %v87, %v275
    %v277 = vpop.f32.mrb[0].mxu0
    %v278 = vadd.f32 %v91, %v277
    %v279 = vpop.f32.mrb[0].mxu0
    %v280 = vadd.f32 %v87, %v279
    %v281 = vpop.f32.mrb[0].mxu0
    %v282 = vadd.f32 %v91, %v281
    %283 = vmatprep.mubr.bf16.mxu0 0
    %284 = vmatmul.mubr.bf16.gmra.mrb[0].mxu0 %v179
    %v285 = vpop.f32.mrb[0].mxu0
    %v286 = vadd.f32 %v87, %v285
    %v287 = vpop.f32.mrb[0].mxu0
    %v288 = vadd.f32 %v91, %v287
    %v289 = vpop.f32.mrb[0].mxu0
    %v290 = vadd.f32 %v87, %v289
    %v291 = vpop.f32.mrb[0].mxu0
    %v292 = vadd.f32 %v91, %v291
    %293 = vmatprep.mubr.bf16.mxu0 0
    %294 = vmatmul.mubr.bf16.gmra.mrb[0].mxu0 %v182
    %v295 = vpop.f32.mrb[0].mxu0
    %v296 = vadd.f32 %v87, %v295
    %v297 = vpop.f32.mrb[0].mxu0
    %v298 = vadd.f32 %v91, %v297
    %v299 = vpop.f32.mrb[0].mxu0
    %v300 = vadd.f32 %v87, %v299
    %v301 = vpop.f32.mrb[0].mxu0
    %v302 = vadd.f32 %v91, %v301
    %303 = vdwg.mxu0
    %v304 = vmax.f32 %v226, 0.0
    %v305 = vmax.f32 %v228, 0.0
    %v306 = vmax.f32 %v230, 0.0
    %v307 = vmax.f32 %v232, 0.0
    %v308 = vmax.f32 %v236, 0.0
    %v309 = vmax.f32 %v238, 0.0
    %v310 = vmax.f32 %v240, 0.0
    %v311 = vmax.f32 %v242, 0.0
    %v312 = vmax.f32 %v246, 0.0
    %v313 = vmax.f32 %v248, 0.0
    %v314 = vmax.f32 %v250, 0.0
    %v315 = vmax.f32 %v252, 0.0
    %v316 = vmax.f32 %v256, 0.0
    %v317 = vmax.f32 %v258, 0.0
    %v318 = vmax.f32 %v260, 0.0
    %v319 = vmax.f32 %v262, 0.0
    %v320 = vmax.f32 %v266, 0.0
    %v321 = vmax.f32 %v268, 0.0
    %v322 = vmax.f32 %v270, 0.0
    %v323 = vmax.f32 %v272, 0.0
    %v324 = vmax.f32 %v276, 0.0
    %v325 = vmax.f32 %v278, 0.0
    %v326 = vmax.f32 %v280, 0.0
    %v327 = vmax.f32 %v282, 0.0
    %v328 = vmax.f32 %v286, 0.0
    %v329 = vmax.f32 %v288, 0.0
    %v330 = vmax.f32 %v290, 0.0
    %v331 = vmax.f32 %v292, 0.0
    %v332 = vmax.f32 %v296, 0.0
    %v333 = vmax.f32 %v298, 0.0
    %v334 = vmax.f32 %v300, 0.0
    %v335 = vmax.f32 %v302, 0.0
    %v336 = vpack.c.bf16 %v306, %v304
    %v337 = vpack.c.bf16 %v307, %v305
    %v338 = vpack.c.bf16 %v310, %v308
    %v339 = vpack.c.bf16 %v311, %v309
    %v340 = vpack.c.bf16 %v314, %v312
    %v341 = vpack.c.bf16 %v315, %v313
    %v342 = vpack.c.bf16 %v318, %v316
    %v343 = vpack.c.bf16 %v319, %v317
    %v344 = vpack.c.bf16 %v322, %v320
    %v345 = vpack.c.bf16 %v323, %v321
    %v346 = vpack.c.bf16 %v326, %v324
    %v347 = vpack.c.bf16 %v327, %v325
    %v348 = vpack.c.bf16 %v330, %v328
    %v349 = vpack.c.bf16 %v331, %v329
    %v350 = vpack.c.bf16 %v334, %v332
    %v351 = vpack.c.bf16 %v335, %v333
    %v352 = vld [vmem:[#allocation2] sm:$0xff]
    %v353 = vld [vmem:[#allocation2 + $0x8] sm:$0xff]
    %v354 = vld [vmem:[#allocation2 + $0x10] sm:$0xff]
    %v355 = vld [vmem:[#allocation2 + $0x18] sm:$0xff]
    %v356 = vld [vmem:[#allocation2 + $0x20] sm:$0xff]
    %v357 = vld [vmem:[#allocation2 + $0x28] sm:$0xff]
    %v358 = vld [vmem:[#allocation2 + $0x30] sm:$0xff]
    %v359 = vld [vmem:[#allocation2 + $0x38] sm:$0xff]
    %v360 = vld [vmem:[#allocation2 + $0x40] sm:$0xff]
    %v361 = vld [vmem:[#allocation2 + $0x48] sm:$0xff]
    %v362 = vld [vmem:[#allocation2 + $0x50] sm:$0xff]
    %v363 = vld [vmem:[#allocation2 + $0x58] sm:$0xff]
    %v364 = vld [vmem:[#allocation2 + $0x60] sm:$0xff]
    %v365 = vld [vmem:[#allocation2 + $0x68] sm:$0xff]
    %v366 = vld [vmem:[#allocation2 + $0x70] sm:$0xff]
    %v367 = vld [vmem:[#allocation2 + $0x78] sm:$0xff]
    %v368 = vld [vmem:[#allocation2 + $0x80] sm:$0xff]
    %v369 = vld [vmem:[#allocation2 + $0x88] sm:$0xff]
    %v370 = vld [vmem:[#allocation2 + $0x90] sm:$0xff]
    %v371 = vld [vmem:[#allocation2 + $0x98] sm:$0xff]
    %v372 = vld [vmem:[#allocation2 + $0xa0] sm:$0xff]
    %v373 = vld [vmem:[#allocation2 + $0xa8] sm:$0xff]
    %v374 = vld [vmem:[#allocation2 + $0xb0] sm:$0xff]
    %v375 = vld [vmem:[#allocation2 + $0xb8] sm:$0xff]
    %v376 = vld [vmem:[#allocation2 + $0xc0] sm:$0xff]
    %v377 = vld [vmem:[#allocation2 + $0xc8] sm:$0xff]
    %v378 = vld [vmem:[#allocation2 + $0xd0] sm:$0xff]
    %v379 = vld [vmem:[#allocation2 + $0xd8] sm:$0xff]
    %v380 = vld [vmem:[#allocation2 + $0xe0] sm:$0xff]
    %v381 = vld [vmem:[#allocation2 + $0xe8] sm:$0xff]
    %v382 = vld [vmem:[#allocation2 + $0xf0] sm:$0xff]
    %v383 = vld [vmem:[#allocation2 + $0xf8] sm:$0xff]
    %v384 = vld [vmem:[%s4] sm:$0x3]
    %v386 = vlaneseq
    %v387 = vshrl.u32 %v386, 7
    %v388 = vsub.s32 0, %v387
    %v389 = vrot.slane %v384, %v388
    %v390 = vlaneseq
    %v391 = vshrl.u32 %v390, 7
    %v392 = vsub.s32 1, %v391
    %v393 = vrot.slane %v384, %v392
    %v428 = vunpack.c.l.b16 %v352
    %v429 = vunpack.c.h.b16 %v352
    %v430 = vunpack.c.l.b16 %v353
    %v431 = vunpack.c.h.b16 %v353
    %v432 = vunpack.c.l.b16 %v354
    %v433 = vunpack.c.h.b16 %v354
    %v434 = vunpack.c.l.b16 %v355
    %v435 = vunpack.c.h.b16 %v355
    %v436 = vunpack.c.l.b16 %v356
    %v437 = vunpack.c.h.b16 %v356
    %v438 = vunpack.c.l.b16 %v357
    %v439 = vunpack.c.h.b16 %v357
    %v440 = vunpack.c.l.b16 %v358
    %v441 = vunpack.c.h.b16 %v358
    %v442 = vunpack.c.l.b16 %v359
    %v443 = vunpack.c.h.b16 %v359
    %v444 = vunpack.c.l.b16 %v360
    %v445 = vunpack.c.h.b16 %v360
    %v446 = vunpack.c.l.b16 %v361
    %v447 = vunpack.c.h.b16 %v361
    %v448 = vunpack.c.l.b16 %v362
    %v449 = vunpack.c.h.b16 %v362
    %v450 = vunpack.c.l.b16 %v363
    %v451 = vunpack.c.h.b16 %v363
    %v452 = vunpack.c.l.b16 %v364
    %v453 = vunpack.c.h.b16 %v364
    %v454 = vunpack.c.l.b16 %v365
    %v455 = vunpack.c.h.b16 %v365
    %v456 = vunpack.c.l.b16 %v366
    %v457 = vunpack.c.h.b16 %v366
    %v458 = vunpack.c.l.b16 %v367
    %v459 = vunpack.c.h.b16 %v367
    %v460 = vunpack.c.l.b16 %v368
    %v461 = vunpack.c.h.b16 %v368
    %v462 = vunpack.c.l.b16 %v369
    %v463 = vunpack.c.h.b16 %v369
    %v464 = vunpack.c.l.b16 %v370
    %v465 = vunpack.c.h.b16 %v370
    %v466 = vunpack.c.l.b16 %v371
    %v467 = vunpack.c.h.b16 %v371
    %v468 = vunpack.c.l.b16 %v372
    %v469 = vunpack.c.h.b16 %v372
    %v470 = vunpack.c.l.b16 %v373
    %v471 = vunpack.c.h.b16 %v373
    %v472 = vunpack.c.l.b16 %v374
    %v473 = vunpack.c.h.b16 %v374
    %v474 = vunpack.c.l.b16 %v375
    %v475 = vunpack.c.h.b16 %v375
    %v476 = vunpack.c.l.b16 %v376
    %v477 = vunpack.c.h.b16 %v376
    %v478 = vunpack.c.l.b16 %v377
    %v479 = vunpack.c.h.b16 %v377
    %v480 = vunpack.c.l.b16 %v378
    %v481 = vunpack.c.h.b16 %v378
    %v482 = vunpack.c.l.b16 %v379
    %v483 = vunpack.c.h.b16 %v379
    %v484 = vunpack.c.l.b16 %v380
    %v485 = vunpack.c.h.b16 %v380
    %v486 = vunpack.c.l.b16 %v381
    %v487 = vunpack.c.h.b16 %v381
    %v488 = vunpack.c.l.b16 %v382
    %v489 = vunpack.c.h.b16 %v382
    %v490 = vunpack.c.l.b16 %v383
    %v491 = vunpack.c.h.b16 %v383
    %v492 = vpack.c.b16 %v430, %v428
    %v493 = vpack.c.b16 %v431, %v429
    %v494 = vpack.c.b16 %v434, %v432
    %v495 = vpack.c.b16 %v435, %v433
    %v496 = vpack.c.b16 %v438, %v436
    %v497 = vpack.c.b16 %v439, %v437
    %v498 = vpack.c.b16 %v442, %v440
    %v499 = vpack.c.b16 %v443, %v441
    %v500 = vpack.c.b16 %v446, %v444
    %v501 = vpack.c.b16 %v447, %v445
    %v502 = vpack.c.b16 %v450, %v448
    %v503 = vpack.c.b16 %v451, %v449
    %v504 = vpack.c.b16 %v454, %v452
    %v505 = vpack.c.b16 %v455, %v453
    %v506 = vpack.c.b16 %v458, %v456
    %v507 = vpack.c.b16 %v459, %v457
    %v508 = vpack.c.b16 %v462, %v460
    %v509 = vpack.c.b16 %v463, %v461
    %v510 = vpack.c.b16 %v466, %v464
    %v511 = vpack.c.b16 %v467, %v465
    %v512 = vpack.c.b16 %v470, %v468
    %v513 = vpack.c.b16 %v471, %v469
    %v514 = vpack.c.b16 %v474, %v472
    %v515 = vpack.c.b16 %v475, %v473
    %v516 = vpack.c.b16 %v478, %v476
    %v517 = vpack.c.b16 %v479, %v477
    %v518 = vpack.c.b16 %v482, %v480
    %v519 = vpack.c.b16 %v483, %v481
    %v520 = vpack.c.b16 %v486, %v484
    %v521 = vpack.c.b16 %v487, %v485
    %v522 = vpack.c.b16 %v490, %v488
    %v523 = vpack.c.b16 %v491, %v489
    %556 = vmatprep.subr.bf16.mxu0 %v493
    %557 = vmatpush1.bf16.msra.mxu0 %v492
    %558 = vmatprep.subr.bf16.mxu0 %v495
    %559 = vmatpush1.bf16.msra.mxu0 %v494
    %560 = vmatprep.subr.bf16.mxu0 %v497
    %561 = vmatpush1.bf16.msra.mxu0 %v496
    %562 = vmatprep.subr.bf16.mxu0 %v499
    %563 = vmatpush1.bf16.msra.mxu0 %v498
    %564 = vmatprep.subr.bf16.mxu0 %v501
    %565 = vmatpush1.bf16.msra.mxu0 %v500
    %566 = vmatprep.subr.bf16.mxu0 %v503
    %567 = vmatpush1.bf16.msra.mxu0 %v502
    %568 = vmatprep.subr.bf16.mxu0 %v505
    %569 = vmatpush1.bf16.msra.mxu0 %v504
    %570 = vmatprep.subr.bf16.mxu0 %v507
    %571 = vmatpush1.bf16.msra.mxu0 %v506
    %572 = vmatprep.subr.bf16.mxu0 %v509
    %573 = vmatpush1.bf16.msra.mxu0 %v508
    %574 = vmatprep.subr.bf16.mxu0 %v511
    %575 = vmatpush1.bf16.msra.mxu0 %v510
    %576 = vmatprep.subr.bf16.mxu0 %v513
    %577 = vmatpush1.bf16.msra.mxu0 %v512
    %578 = vmatprep.subr.bf16.mxu0 %v515
    %579 = vmatpush1.bf16.msra.mxu0 %v514
    %580 = vmatprep.subr.bf16.mxu0 %v517
    %581 = vmatpush1.bf16.msra.mxu0 %v516
    %582 = vmatprep.subr.bf16.mxu0 %v519
    %583 = vmatpush1.bf16.msra.mxu0 %v518
    %584 = vmatprep.subr.bf16.mxu0 %v521
    %585 = vmatpush1.bf16.msra.mxu0 %v520
    %586 = vmatprep.subr.bf16.mxu0 %v523
    %587 = vmatpush1.bf16.msra.mxu0 %v522
    %588 = vmatprep.mubr.bf16.mxu0 %v337
    %589 = vmatmul.mubr.bf16.gmra.mrb[0].mxu0 %v336
    %v590 = vpop.f32.mrb[0].mxu0
    %v591 = vadd.f32 %v389, %v590
    %v592 = vpop.f32.mrb[0].mxu0
    %v593 = vadd.f32 %v393, %v592
    %v594 = vpop.f32.mrb[0].mxu0
    %v595 = vadd.f32 %v389, %v594
    %v596 = vpop.f32.mrb[0].mxu0
    %v597 = vadd.f32 %v393, %v596
    %598 = vmatprep.mubr.bf16.mxu0 %v339
    %599 = vmatmul.mubr.bf16.gmra.mrb[0].mxu0 %v338
    %v600 = vpop.f32.mrb[0].mxu0
    %v601 = vadd.f32 %v389, %v600
    %v602 = vpop.f32.mrb[0].mxu0
    %v603 = vadd.f32 %v393, %v602
    %v604 = vpop.f32.mrb[0].mxu0
    %v605 = vadd.f32 %v389, %v604
    %v606 = vpop.f32.mrb[0].mxu0
    %v607 = vadd.f32 %v393, %v606
    %608 = vmatprep.mubr.bf16.mxu0 %v341
    %609 = vmatmul.mubr.bf16.gmra.mrb[0].mxu0 %v340
    %v610 = vpop.f32.mrb[0].mxu0
    %v611 = vadd.f32 %v389, %v610
    %v612 = vpop.f32.mrb[0].mxu0
    %v613 = vadd.f32 %v393, %v612
    %v614 = vpop.f32.mrb[0].mxu0
    %v615 = vadd.f32 %v389, %v614
    %v616 = vpop.f32.mrb[0].mxu0
    %v617 = vadd.f32 %v393, %v616
    %618 = vmatprep.mubr.bf16.mxu0 %v343
    %619 = vmatmul.mubr.bf16.gmra.mrb[0].mxu0 %v342
    %v620 = vpop.f32.mrb[0].mxu0
    %v621 = vadd.f32 %v389, %v620
    %v622 = vpop.f32.mrb[0].mxu0
    %v623 = vadd.f32 %v393, %v622
    %v624 = vpop.f32.mrb[0].mxu0
    %v625 = vadd.f32 %v389, %v624
    %v626 = vpop.f32.mrb[0].mxu0
    %v627 = vadd.f32 %v393, %v626
    %628 = vmatprep.mubr.bf16.mxu0 %v345
    %629 = vmatmul.mubr.bf16.gmra.mrb[0].mxu0 %v344
    %v630 = vpop.f32.mrb[0].mxu0
    %v631 = vadd.f32 %v389, %v630
    %v632 = vpop.f32.mrb[0].mxu0
    %v633 = vadd.f32 %v393, %v632
    %v634 = vpop.f32.mrb[0].mxu0
    %v635 = vadd.f32 %v389, %v634
    %v636 = vpop.f32.mrb[0].mxu0
    %v637 = vadd.f32 %v393, %v636
    %638 = vmatprep.mubr.bf16.mxu0 %v347
    %639 = vmatmul.mubr.bf16.gmra.mrb[0].mxu0 %v346
    %v640 = vpop.f32.mrb[0].mxu0
    %v641 = vadd.f32 %v389, %v640
    %v642 = vpop.f32.mrb[0].mxu0
    %v643 = vadd.f32 %v393, %v642
    %v644 = vpop.f32.mrb[0].mxu0
    %v645 = vadd.f32 %v389, %v644
    %v646 = vpop.f32.mrb[0].mxu0
    %v647 = vadd.f32 %v393, %v646
    %648 = vmatprep.mubr.bf16.mxu0 %v349
    %649 = vmatmul.mubr.bf16.gmra.mrb[0].mxu0 %v348
    %v650 = vpop.f32.mrb[0].mxu0
    %v651 = vadd.f32 %v389, %v650
    %v652 = vpop.f32.mrb[0].mxu0
    %v653 = vadd.f32 %v393, %v652
    %v654 = vpop.f32.mrb[0].mxu0
    %v655 = vadd.f32 %v389, %v654
    %v656 = vpop.f32.mrb[0].mxu0
    %v657 = vadd.f32 %v393, %v656
    %658 = vmatprep.mubr.bf16.mxu0 %v351
    %659 = vmatmul.mubr.bf16.gmra.mrb[0].mxu0 %v350
    %v660 = vpop.f32.mrb[0].mxu0
    %v661 = vadd.f32 %v389, %v660
    %v662 = vpop.f32.mrb[0].mxu0
    %v663 = vadd.f32 %v393, %v662
    %v664 = vpop.f32.mrb[0].mxu0
    %v665 = vadd.f32 %v389, %v664
    %v666 = vpop.f32.mrb[0].mxu0
    %v667 = vadd.f32 %v393, %v666
    %668 = vdwg.mxu0
    %v669 = vmax.f32 %v591, 0.0
    %v670 = vmax.f32 %v593, 0.0
    %v671 = vmax.f32 %v595, 0.0
    %v672 = vmax.f32 %v597, 0.0
    %v673 = vmax.f32 %v601, 0.0
    %v674 = vmax.f32 %v603, 0.0
    %v675 = vmax.f32 %v605, 0.0
    %v676 = vmax.f32 %v607, 0.0
    %v677 = vmax.f32 %v611, 0.0
    %v678 = vmax.f32 %v613, 0.0
    %v679 = vmax.f32 %v615, 0.0
    %v680 = vmax.f32 %v617, 0.0
    %v681 = vmax.f32 %v621, 0.0
    %v682 = vmax.f32 %v623, 0.0
    %v683 = vmax.f32 %v625, 0.0
    %v684 = vmax.f32 %v627, 0.0
    %v685 = vmax.f32 %v631, 0.0
    %v686 = vmax.f32 %v633, 0.0
    %v687 = vmax.f32 %v635, 0.0
    %v688 = vmax.f32 %v637, 0.0
    %v689 = vmax.f32 %v641, 0.0
    %v690 = vmax.f32 %v643, 0.0
    %v691 = vmax.f32 %v645, 0.0
    %v692 = vmax.f32 %v647, 0.0
    %v693 = vmax.f32 %v651, 0.0
    %v694 = vmax.f32 %v653, 0.0
    %v695 = vmax.f32 %v655, 0.0
    %v696 = vmax.f32 %v657, 0.0
    %v697 = vmax.f32 %v661, 0.0
    %v698 = vmax.f32 %v663, 0.0
    %v699 = vmax.f32 %v665, 0.0
    %v700 = vmax.f32 %v667, 0.0
    %v701 = vpack.c.bf16 %v671, %v669
    %v702 = vpack.c.bf16 %v672, %v670
    %v703 = vpack.c.bf16 %v675, %v673
    %v704 = vpack.c.bf16 %v676, %v674
    %v705 = vpack.c.bf16 %v679, %v677
    %v706 = vpack.c.bf16 %v680, %v678
    %v707 = vpack.c.bf16 %v683, %v681
    %v708 = vpack.c.bf16 %v684, %v682
    %v709 = vpack.c.bf16 %v687, %v685
    %v710 = vpack.c.bf16 %v688, %v686
    %v711 = vpack.c.bf16 %v691, %v689
    %v712 = vpack.c.bf16 %v692, %v690
    %v713 = vpack.c.bf16 %v695, %v693
    %v714 = vpack.c.bf16 %v696, %v694
    %v715 = vpack.c.bf16 %v699, %v697
    %v716 = vpack.c.bf16 %v700, %v698
    %v717 = vld [vmem:[#allocation4] sm:$0xff]
    %v718 = vld [vmem:[#allocation4 + $0x8] sm:$0xff]
    %v719 = vld [vmem:[#allocation4 + $0x10] sm:$0xff]
    %v720 = vld [vmem:[#allocation4 + $0x18] sm:$0xff]
    %v721 = vld [vmem:[#allocation4 + $0x20] sm:$0xff]
    %v722 = vld [vmem:[#allocation4 + $0x28] sm:$0xff]
    %v723 = vld [vmem:[#allocation4 + $0x30] sm:$0xff]
    %v724 = vld [vmem:[#allocation4 + $0x38] sm:$0xff]
    %v725 = vld [vmem:[#allocation4 + $0x40] sm:$0xff]
    %v726 = vld [vmem:[#allocation4 + $0x48] sm:$0xff]
    %v727 = vld [vmem:[#allocation4 + $0x50] sm:$0xff]
    %v728 = vld [vmem:[#allocation4 + $0x58] sm:$0xff]
    %v729 = vld [vmem:[#allocation4 + $0x60] sm:$0xff]
    %v730 = vld [vmem:[#allocation4 + $0x68] sm:$0xff]
    %v731 = vld [vmem:[#allocation4 + $0x70] sm:$0xff]
    %v732 = vld [vmem:[#allocation4 + $0x78] sm:$0xff]
    %v733 = vld [vmem:[#allocation4 + $0x80] sm:$0xff]
    %v734 = vld [vmem:[#allocation4 + $0x88] sm:$0xff]
    %v735 = vld [vmem:[#allocation4 + $0x90] sm:$0xff]
    %v736 = vld [vmem:[#allocation4 + $0x98] sm:$0xff]
    %v737 = vld [vmem:[#allocation4 + $0xa0] sm:$0xff]
    %v738 = vld [vmem:[#allocation4 + $0xa8] sm:$0xff]
    %v739 = vld [vmem:[#allocation4 + $0xb0] sm:$0xff]
    %v740 = vld [vmem:[#allocation4 + $0xb8] sm:$0xff]
    %v741 = vld [vmem:[#allocation4 + $0xc0] sm:$0xff]
    %v742 = vld [vmem:[#allocation4 + $0xc8] sm:$0xff]
    %v743 = vld [vmem:[#allocation4 + $0xd0] sm:$0xff]
    %v744 = vld [vmem:[#allocation4 + $0xd8] sm:$0xff]
    %v745 = vld [vmem:[#allocation4 + $0xe0] sm:$0xff]
    %v746 = vld [vmem:[#allocation4 + $0xe8] sm:$0xff]
    %v747 = vld [vmem:[#allocation4 + $0xf0] sm:$0xff]
    %v748 = vld [vmem:[#allocation4 + $0xf8] sm:$0xff]
    %v749 = vld [vmem:[%s6] sm:$0x3]
    %v751 = vlaneseq
    %v752 = vshrl.u32 %v751, 7
    %v753 = vsub.s32 0, %v752
    %v754 = vrot.slane %v749, %v753
    %v755 = vlaneseq
    %v756 = vshrl.u32 %v755, 7
    %v757 = vsub.s32 1, %v756
    %v758 = vrot.slane %v749, %v757
    %v793 = vunpack.c.l.b16 %v717
    %v794 = vunpack.c.h.b16 %v717
    %v795 = vunpack.c.l.b16 %v718
    %v796 = vunpack.c.h.b16 %v718
    %v797 = vunpack.c.l.b16 %v719
    %v798 = vunpack.c.h.b16 %v719
    %v799 = vunpack.c.l.b16 %v720
    %v800 = vunpack.c.h.b16 %v720
    %v801 = vunpack.c.l.b16 %v721
    %v802 = vunpack.c.h.b16 %v721
    %v803 = vunpack.c.l.b16 %v722
    %v804 = vunpack.c.h.b16 %v722
    %v805 = vunpack.c.l.b16 %v723
    %v806 = vunpack.c.h.b16 %v723
    %v807 = vunpack.c.l.b16 %v724
    %v808 = vunpack.c.h.b16 %v724
    %v809 = vunpack.c.l.b16 %v725
    %v810 = vunpack.c.h.b16 %v725
    %v811 = vunpack.c.l.b16 %v726
    %v812 = vunpack.c.h.b16 %v726
    %v813 = vunpack.c.l.b16 %v727
    %v814 = vunpack.c.h.b16 %v727
    %v815 = vunpack.c.l.b16 %v728
    %v816 = vunpack.c.h.b16 %v728
    %v817 = vunpack.c.l.b16 %v729
    %v818 = vunpack.c.h.b16 %v729
    %v819 = vunpack.c.l.b16 %v730
    %v820 = vunpack.c.h.b16 %v730
    %v821 = vunpack.c.l.b16 %v731
    %v822 = vunpack.c.h.b16 %v731
    %v823 = vunpack.c.l.b16 %v732
    %v824 = vunpack.c.h.b16 %v732
    %v825 = vunpack.c.l.b16 %v733
    %v826 = vunpack.c.h.b16 %v733
    %v827 = vunpack.c.l.b16 %v734
    %v828 = vunpack.c.h.b16 %v734
    %v829 = vunpack.c.l.b16 %v735
    %v830 = vunpack.c.h.b16 %v735
    %v831 = vunpack.c.l.b16 %v736
    %v832 = vunpack.c.h.b16 %v736
    %v833 = vunpack.c.l.b16 %v737
    %v834 = vunpack.c.h.b16 %v737
    %v835 = vunpack.c.l.b16 %v738
    %v836 = vunpack.c.h.b16 %v738
    %v837 = vunpack.c.l.b16 %v739
    %v838 = vunpack.c.h.b16 %v739
    %v839 = vunpack.c.l.b16 %v740
    %v840 = vunpack.c.h.b16 %v740
    %v841 = vunpack.c.l.b16 %v741
    %v842 = vunpack.c.h.b16 %v741
    %v843 = vunpack.c.l.b16 %v742
    %v844 = vunpack.c.h.b16 %v742
    %v845 = vunpack.c.l.b16 %v743
    %v846 = vunpack.c.h.b16 %v743
    %v847 = vunpack.c.l.b16 %v744
    %v848 = vunpack.c.h.b16 %v744
    %v849 = vunpack.c.l.b16 %v745
    %v850 = vunpack.c.h.b16 %v745
    %v851 = vunpack.c.l.b16 %v746
    %v852 = vunpack.c.h.b16 %v746
    %v853 = vunpack.c.l.b16 %v747
    %v854 = vunpack.c.h.b16 %v747
    %v855 = vunpack.c.l.b16 %v748
    %v856 = vunpack.c.h.b16 %v748
    %v857 = vpack.c.b16 %v795, %v793
    %v858 = vpack.c.b16 %v796, %v794
    %v859 = vpack.c.b16 %v799, %v797
    %v860 = vpack.c.b16 %v800, %v798
    %v861 = vpack.c.b16 %v803, %v801
    %v862 = vpack.c.b16 %v804, %v802
    %v863 = vpack.c.b16 %v807, %v805
    %v864 = vpack.c.b16 %v808, %v806
    %v865 = vpack.c.b16 %v811, %v809
    %v866 = vpack.c.b16 %v812, %v810
    %v867 = vpack.c.b16 %v815, %v813
    %v868 = vpack.c.b16 %v816, %v814
    %v869 = vpack.c.b16 %v819, %v817
    %v870 = vpack.c.b16 %v820, %v818
    %v871 = vpack.c.b16 %v823, %v821
    %v872 = vpack.c.b16 %v824, %v822
    %v873 = vpack.c.b16 %v827, %v825
    %v874 = vpack.c.b16 %v828, %v826
    %v875 = vpack.c.b16 %v831, %v829
    %v876 = vpack.c.b16 %v832, %v830
    %v877 = vpack.c.b16 %v835, %v833
    %v878 = vpack.c.b16 %v836, %v834
    %v879 = vpack.c.b16 %v839, %v837
    %v880 = vpack.c.b16 %v840, %v838
    %v881 = vpack.c.b16 %v843, %v841
    %v882 = vpack.c.b16 %v844, %v842
    %v883 = vpack.c.b16 %v847, %v845
    %v884 = vpack.c.b16 %v848, %v846
    %v885 = vpack.c.b16 %v851, %v849
    %v886 = vpack.c.b16 %v852, %v850
    %v887 = vpack.c.b16 %v855, %v853
    %v888 = vpack.c.b16 %v856, %v854
    %921 = vmatprep.subr.bf16.mxu0 %v858
    %922 = vmatpush1.bf16.msra.mxu0 %v857
    %923 = vmatprep.subr.bf16.mxu0 %v860
    %924 = vmatpush1.bf16.msra.mxu0 %v859
    %925 = vmatprep.subr.bf16.mxu0 %v862
    %926 = vmatpush1.bf16.msra.mxu0 %v861
    %927 = vmatprep.subr.bf16.mxu0 %v864
    %928 = vmatpush1.bf16.msra.mxu0 %v863
    %929 = vmatprep.subr.bf16.mxu0 %v866
    %930 = vmatpush1.bf16.msra.mxu0 %v865
    %931 = vmatprep.subr.bf16.mxu0 %v868
    %932 = vmatpush1.bf16.msra.mxu0 %v867
    %933 = vmatprep.subr.bf16.mxu0 %v870
    %934 = vmatpush1.bf16.msra.mxu0 %v869
    %935 = vmatprep.subr.bf16.mxu0 %v872
    %936 = vmatpush1.bf16.msra.mxu0 %v871
    %937 = vmatprep.subr.bf16.mxu0 %v874
    %938 = vmatpush1.bf16.msra.mxu0 %v873
    %939 = vmatprep.subr.bf16.mxu0 %v876
    %940 = vmatpush1.bf16.msra.mxu0 %v875
    %941 = vmatprep.subr.bf16.mxu0 %v878
    %942 = vmatpush1.bf16.msra.mxu0 %v877
    %943 = vmatprep.subr.bf16.mxu0 %v880
    %944 = vmatpush1.bf16.msra.mxu0 %v879
    %945 = vmatprep.subr.bf16.mxu0 %v882
    %946 = vmatpush1.bf16.msra.mxu0 %v881
    %947 = vmatprep.subr.bf16.mxu0 %v884
    %948 = vmatpush1.bf16.msra.mxu0 %v883
    %949 = vmatprep.subr.bf16.mxu0 %v886
    %950 = vmatpush1.bf16.msra.mxu0 %v885
    %951 = vmatprep.subr.bf16.mxu0 %v888
    %952 = vmatpush1.bf16.msra.mxu0 %v887
    %953 = vmatprep.mubr.bf16.mxu0 %v702
    %954 = vmatmul.mubr.bf16.gmra.mrb[0].mxu0 %v701
    %v955 = vpop.f32.mrb[0].mxu0
    %v956 = vadd.f32 %v754, %v955
    %v957 = vpop.f32.mrb[0].mxu0
    %v958 = vadd.f32 %v758, %v957
    %v959 = vpop.f32.mrb[0].mxu0
    %v960 = vadd.f32 %v754, %v959
    %v961 = vpop.f32.mrb[0].mxu0
    %v962 = vadd.f32 %v758, %v961
    %963 = vmatprep.mubr.bf16.mxu0 %v704
    %964 = vmatmul.mubr.bf16.gmra.mrb[0].mxu0 %v703
    %v965 = vpop.f32.mrb[0].mxu0
    %v966 = vadd.f32 %v754, %v965
    %v967 = vpop.f32.mrb[0].mxu0
    %v968 = vadd.f32 %v758, %v967
    %v969 = vpop.f32.mrb[0].mxu0
    %v970 = vadd.f32 %v754, %v969
    %v971 = vpop.f32.mrb[0].mxu0
    %v972 = vadd.f32 %v758, %v971
    %973 = vmatprep.mubr.bf16.mxu0 %v706
    %974 = vmatmul.mubr.bf16.gmra.mrb[0].mxu0 %v705
    %v975 = vpop.f32.mrb[0].mxu0
    %v976 = vadd.f32 %v754, %v975
    %v977 = vpop.f32.mrb[0].mxu0
    %v978 = vadd.f32 %v758, %v977
    %v979 = vpop.f32.mrb[0].mxu0
    %v980 = vadd.f32 %v754, %v979
    %v981 = vpop.f32.mrb[0].mxu0
    %v982 = vadd.f32 %v758, %v981
    %983 = vmatprep.mubr.bf16.mxu0 %v708
    %984 = vmatmul.mubr.bf16.gmra.mrb[0].mxu0 %v707
    %v985 = vpop.f32.mrb[0].mxu0
    %v986 = vadd.f32 %v754, %v985
    %v987 = vpop.f32.mrb[0].mxu0
    %v988 = vadd.f32 %v758, %v987
    %v989 = vpop.f32.mrb[0].mxu0
    %v990 = vadd.f32 %v754, %v989
    %v991 = vpop.f32.mrb[0].mxu0
    %v992 = vadd.f32 %v758, %v991
    %993 = vmatprep.mubr.bf16.mxu0 %v710
    %994 = vmatmul.mubr.bf16.gmra.mrb[0].mxu0 %v709
    %v995 = vpop.f32.mrb[0].mxu0
    %v996 = vadd.f32 %v754, %v995
    %v997 = vpop.f32.mrb[0].mxu0
    %v998 = vadd.f32 %v758, %v997
    %v999 = vpop.f32.mrb[0].mxu0
    %v1000 = vadd.f32 %v754, %v999
    %v1001 = vpop.f32.mrb[0].mxu0
    %v1002 = vadd.f32 %v758, %v1001
    %1003 = vmatprep.mubr.bf16.mxu0 %v712
    %1004 = vmatmul.mubr.bf16.gmra.mrb[0].mxu0 %v711
    %v1005 = vpop.f32.mrb[0].mxu0
    %v1006 = vadd.f32 %v754, %v1005
    %v1007 = vpop.f32.mrb[0].mxu0
    %v1008 = vadd.f32 %v758, %v1007
    %v1009 = vpop.f32.mrb[0].mxu0
    %v1010 = vadd.f32 %v754, %v1009
    %v1011 = vpop.f32.mrb[0].mxu0
    %v1012 = vadd.f32 %v758, %v1011
    %1013 = vmatprep.mubr.bf16.mxu0 %v714
    %1014 = vmatmul.mubr.bf16.gmra.mrb[0].mxu0 %v713
    %v1015 = vpop.f32.mrb[0].mxu0
    %v1016 = vadd.f32 %v754, %v1015
    %v1017 = vpop.f32.mrb[0].mxu0
    %v1018 = vadd.f32 %v758, %v1017
    %v1019 = vpop.f32.mrb[0].mxu0
    %v1020 = vadd.f32 %v754, %v1019
    %v1021 = vpop.f32.mrb[0].mxu0
    %v1022 = vadd.f32 %v758, %v1021
    %1023 = vmatprep.mubr.bf16.mxu0 %v716
    %1024 = vmatmul.mubr.bf16.gmra.mrb[0].mxu0 %v715
    %v1025 = vpop.f32.mrb[0].mxu0
    %v1026 = vadd.f32 %v754, %v1025
    %v1027 = vpop.f32.mrb[0].mxu0
    %v1028 = vadd.f32 %v758, %v1027
    %v1029 = vpop.f32.mrb[0].mxu0
    %v1030 = vadd.f32 %v754, %v1029
    %v1031 = vpop.f32.mrb[0].mxu0
    %v1032 = vadd.f32 %v758, %v1031
    %1033 = vdwg.mxu0
    %v1034 = vmax.f32 %v956, 0.0
    %v1035 = vmax.f32 %v958, 0.0
    %v1036 = vmax.f32 %v960, 0.0
    %v1037 = vmax.f32 %v962, 0.0
    %v1038 = vmax.f32 %v966, 0.0
    %v1039 = vmax.f32 %v968, 0.0
    %v1040 = vmax.f32 %v970, 0.0
    %v1041 = vmax.f32 %v972, 0.0
    %v1042 = vmax.f32 %v976, 0.0
    %v1043 = vmax.f32 %v978, 0.0
    %v1044 = vmax.f32 %v980, 0.0
    %v1045 = vmax.f32 %v982, 0.0
    %v1046 = vmax.f32 %v986, 0.0
    %v1047 = vmax.f32 %v988, 0.0
    %v1048 = vmax.f32 %v990, 0.0
    %v1049 = vmax.f32 %v992, 0.0
    %v1050 = vmax.f32 %v996, 0.0
    %v1051 = vmax.f32 %v998, 0.0
    %v1052 = vmax.f32 %v1000, 0.0
    %v1053 = vmax.f32 %v1002, 0.0
    %v1054 = vmax.f32 %v1006, 0.0
    %v1055 = vmax.f32 %v1008, 0.0
    %v1056 = vmax.f32 %v1010, 0.0
    %v1057 = vmax.f32 %v1012, 0.0
    %v1058 = vmax.f32 %v1016, 0.0
    %v1059 = vmax.f32 %v1018, 0.0
    %v1060 = vmax.f32 %v1020, 0.0
    %v1061 = vmax.f32 %v1022, 0.0
    %v1062 = vmax.f32 %v1026, 0.0
    %v1063 = vmax.f32 %v1028, 0.0
    %v1064 = vmax.f32 %v1030, 0.0
    %v1065 = vmax.f32 %v1032, 0.0
    %v1066 = vpack.c.bf16 %v1036, %v1034
    %v1067 = vpack.c.bf16 %v1037, %v1035
    %v1068 = vpack.c.bf16 %v1040, %v1038
    %v1069 = vpack.c.bf16 %v1041, %v1039
    %v1070 = vpack.c.bf16 %v1044, %v1042
    %v1071 = vpack.c.bf16 %v1045, %v1043
    %v1072 = vpack.c.bf16 %v1048, %v1046
    %v1073 = vpack.c.bf16 %v1049, %v1047
    %v1074 = vpack.c.bf16 %v1052, %v1050
    %v1075 = vpack.c.bf16 %v1053, %v1051
    %v1076 = vpack.c.bf16 %v1056, %v1054
    %v1077 = vpack.c.bf16 %v1057, %v1055
    %v1078 = vpack.c.bf16 %v1060, %v1058
    %v1079 = vpack.c.bf16 %v1061, %v1059
    %v1080 = vpack.c.bf16 %v1064, %v1062
    %v1081 = vpack.c.bf16 %v1065, %v1063
    %v1082 = vld [vmem:[%s7] sm:$0xf]
    %v1083 = vld [vmem:[%s7 + $0x4] sm:$0xf]
    %v1084 = vld [vmem:[%s7 + $0x8] sm:$0xf]
    %v1085 = vld [vmem:[%s7 + $0xc] sm:$0xf]
    %v1086 = vld [vmem:[%s7 + $0x10] sm:$0xf]
    %v1087 = vld [vmem:[%s7 + $0x14] sm:$0xf]
    %v1088 = vld [vmem:[%s7 + $0x18] sm:$0xf]
    %v1089 = vld [vmem:[%s7 + $0x1c] sm:$0xf]
    %v1090 = vld [vmem:[%s7 + $0x20] sm:$0xf]
    %v1091 = vld [vmem:[%s7 + $0x24] sm:$0xf]
    %v1092 = vld [vmem:[%s7 + $0x28] sm:$0xf]
    %v1093 = vld [vmem:[%s7 + $0x2c] sm:$0xf]
    %v1094 = vld [vmem:[%s7 + $0x30] sm:$0xf]
    %v1095 = vld [vmem:[%s7 + $0x34] sm:$0xf]
    %v1096 = vld [vmem:[%s7 + $0x38] sm:$0xf]
    %v1097 = vld [vmem:[%s7 + $0x3c] sm:$0xf]
    %v1098 = vld [vmem:[%s7 + $0x40] sm:$0xf]
    %v1099 = vld [vmem:[%s7 + $0x44] sm:$0xf]
    %v1100 = vld [vmem:[%s7 + $0x48] sm:$0xf]
    %v1101 = vld [vmem:[%s7 + $0x4c] sm:$0xf]
    %v1102 = vld [vmem:[%s7 + $0x50] sm:$0xf]
    %v1103 = vld [vmem:[%s7 + $0x54] sm:$0xf]
    %v1104 = vld [vmem:[%s7 + $0x58] sm:$0xf]
    %v1105 = vld [vmem:[%s7 + $0x5c] sm:$0xf]
    %v1106 = vld [vmem:[%s7 + $0x60] sm:$0xf]
    %v1107 = vld [vmem:[%s7 + $0x64] sm:$0xf]
    %v1108 = vld [vmem:[%s7 + $0x68] sm:$0xf]
    %v1109 = vld [vmem:[%s7 + $0x6c] sm:$0xf]
    %v1110 = vld [vmem:[%s7 + $0x70] sm:$0xf]
    %v1111 = vld [vmem:[%s7 + $0x74] sm:$0xf]
    %v1112 = vld [vmem:[%s7 + $0x78] sm:$0xf]
    %v1113 = vld [vmem:[%s7 + $0x7c] sm:$0xf]
    %v1114 = vld [vmem:[%s8] sm:$0x1]
    %v1116 = vlaneseq
    %v1117 = vshrl.u32 %v1116, 7
    %v1118 = vsub.s32 0, %v1117
    %v1119 = vrot.slane %v1114, %v1118
    %v1153 = vunpack.c.l.b16 %v1082
    %v1154 = vunpack.c.l.b16 %v1083
    %v1155 = vunpack.c.l.b16 %v1084
    %v1156 = vunpack.c.l.b16 %v1085
    %v1157 = vunpack.c.l.b16 %v1086
    %v1158 = vunpack.c.l.b16 %v1087
    %v1159 = vunpack.c.l.b16 %v1088
    %v1160 = vunpack.c.l.b16 %v1089
    %v1161 = vunpack.c.l.b16 %v1090
    %v1162 = vunpack.c.l.b16 %v1091
    %v1163 = vunpack.c.l.b16 %v1092
    %v1164 = vunpack.c.l.b16 %v1093
    %v1165 = vunpack.c.l.b16 %v1094
    %v1166 = vunpack.c.l.b16 %v1095
    %v1167 = vunpack.c.l.b16 %v1096
    %v1168 = vunpack.c.l.b16 %v1097
    %v1169 = vunpack.c.l.b16 %v1098
    %v1170 = vunpack.c.l.b16 %v1099
    %v1171 = vunpack.c.l.b16 %v1100
    %v1172 = vunpack.c.l.b16 %v1101
    %v1173 = vunpack.c.l.b16 %v1102
    %v1174 = vunpack.c.l.b16 %v1103
    %v1175 = vunpack.c.l.b16 %v1104
    %v1176 = vunpack.c.l.b16 %v1105
    %v1177 = vunpack.c.l.b16 %v1106
    %v1178 = vunpack.c.l.b16 %v1107
    %v1179 = vunpack.c.l.b16 %v1108
    %v1180 = vunpack.c.l.b16 %v1109
    %v1181 = vunpack.c.l.b16 %v1110
    %v1182 = vunpack.c.l.b16 %v1111
    %v1183 = vunpack.c.l.b16 %v1112
    %v1184 = vunpack.c.l.b16 %v1113
    %v1185 = vpack.c.b16 %v1154, %v1153
    %v1186 = vpack.c.b16 %v1156, %v1155
    %v1187 = vpack.c.b16 %v1158, %v1157
    %v1188 = vpack.c.b16 %v1160, %v1159
    %v1189 = vpack.c.b16 %v1162, %v1161
    %v1190 = vpack.c.b16 %v1164, %v1163
    %v1191 = vpack.c.b16 %v1166, %v1165
    %v1192 = vpack.c.b16 %v1168, %v1167
    %v1193 = vpack.c.b16 %v1170, %v1169
    %v1194 = vpack.c.b16 %v1172, %v1171
    %v1195 = vpack.c.b16 %v1174, %v1173
    %v1196 = vpack.c.b16 %v1176, %v1175
    %v1197 = vpack.c.b16 %v1178, %v1177
    %v1198 = vpack.c.b16 %v1180, %v1179
    %v1199 = vpack.c.b16 %v1182, %v1181
    %v1200 = vpack.c.b16 %v1184, %v1183
    %1217 = vmatprep.subr.bf16.mxu0 0
    %1218 = vmatpush1.bf16.msra.mxu0 %v1185
    %1219 = vmatprep.subr.bf16.mxu0 0
    %1220 = vmatpush1.bf16.msra.mxu0 %v1186
    %1221 = vmatprep.subr.bf16.mxu0 0
    %1222 = vmatpush1.bf16.msra.mxu0 %v1187
    %1223 = vmatprep.subr.bf16.mxu0 0
    %1224 = vmatpush1.bf16.msra.mxu0 %v1188
    %1225 = vmatprep.subr.bf16.mxu0 0
    %1226 = vmatpush1.bf16.msra.mxu0 %v1189
    %1227 = vmatprep.subr.bf16.mxu0 0
    %1228 = vmatpush1.bf16.msra.mxu0 %v1190
    %1229 = vmatprep.subr.bf16.mxu0 0
    %1230 = vmatpush1.bf16.msra.mxu0 %v1191
    %1231 = vmatprep.subr.bf16.mxu0 0
    %1232 = vmatpush1.bf16.msra.mxu0 %v1192
    %1233 = vmatprep.subr.bf16.mxu0 0
    %1234 = vmatpush1.bf16.msra.mxu0 %v1193
    %1235 = vmatprep.subr.bf16.mxu0 0
    %1236 = vmatpush1.bf16.msra.mxu0 %v1194
    %1237 = vmatprep.subr.bf16.mxu0 0
    %1238 = vmatpush1.bf16.msra.mxu0 %v1195
    %1239 = vmatprep.subr.bf16.mxu0 0
    %1240 = vmatpush1.bf16.msra.mxu0 %v1196
    %1241 = vmatprep.subr.bf16.mxu0 0
    %1242 = vmatpush1.bf16.msra.mxu0 %v1197
    %1243 = vmatprep.subr.bf16.mxu0 0
    %1244 = vmatpush1.bf16.msra.mxu0 %v1198
    %1245 = vmatprep.subr.bf16.mxu0 0
    %1246 = vmatpush1.bf16.msra.mxu0 %v1199
    %1247 = vmatprep.subr.bf16.mxu0 0
    %1248 = vmatpush1.bf16.msra.mxu0 %v1200
    %1249 = vmatprep.mubr.bf16.mxu0 %v1067
    %1250 = vmatmul.mubr.bf16.gmra.mrb[0].mxu0 %v1066
    %v1251 = vpop.f32.mrb[0].mxu0
    %v1252 = vadd.f32 %v1119, %v1251
    %v1253 = vpop.f32.mrb[0].mxu0
    %v1254 = vpop.f32.mrb[0].mxu0
    %v1255 = vadd.f32 %v1119, %v1254
    %v1256 = vpop.f32.mrb[0].mxu0
    %1257 = vmatprep.mubr.bf16.mxu0 %v1069
    %1258 = vmatmul.mubr.bf16.gmra.mrb[0].mxu0 %v1068
    %v1259 = vpop.f32.mrb[0].mxu0
    %v1260 = vadd.f32 %v1119, %v1259
    %v1261 = vpop.f32.mrb[0].mxu0
    %v1262 = vpop.f32.mrb[0].mxu0
    %v1263 = vadd.f32 %v1119, %v1262
    %v1264 = vpop.f32.mrb[0].mxu0
    %1265 = vmatprep.mubr.bf16.mxu0 %v1071
    %1266 = vmatmul.mubr.bf16.gmra.mrb[0].mxu0 %v1070
    %v1267 = vpop.f32.mrb[0].mxu0
    %v1268 = vadd.f32 %v1119, %v1267
    %v1269 = vpop.f32.mrb[0].mxu0
    %v1270 = vpop.f32.mrb[0].mxu0
    %v1271 = vadd.f32 %v1119, %v1270
    %v1272 = vpop.f32.mrb[0].mxu0
    %1273 = vmatprep.mubr.bf16.mxu0 %v1073
    %1274 = vmatmul.mubr.bf16.gmra.mrb[0].mxu0 %v1072
    %v1275 = vpop.f32.mrb[0].mxu0
    %v1276 = vadd.f32 %v1119, %v1275
    %v1277 = vpop.f32.mrb[0].mxu0
    %v1278 = vpop.f32.mrb[0].mxu0
    %v1279 = vadd.f32 %v1119, %v1278
    %v1280 = vpop.f32.mrb[0].mxu0
    %1281 = vmatprep.mubr.bf16.mxu0 %v1075
    %1282 = vmatmul.mubr.bf16.gmra.mrb[0].mxu0 %v1074
    %v1283 = vpop.f32.mrb[0].mxu0
    %v1284 = vadd.f32 %v1119, %v1283
    %v1285 = vpop.f32.mrb[0].mxu0
    %v1286 = vpop.f32.mrb[0].mxu0
    %v1287 = vadd.f32 %v1119, %v1286
    %v1288 = vpop.f32.mrb[0].mxu0
    %1289 = vmatprep.mubr.bf16.mxu0 %v1077
    %1290 = vmatmul.mubr.bf16.gmra.mrb[0].mxu0 %v1076
    %v1291 = vpop.f32.mrb[0].mxu0
    %v1292 = vadd.f32 %v1119, %v1291
    %v1293 = vpop.f32.mrb[0].mxu0
    %v1294 = vpop.f32.mrb[0].mxu0
    %v1295 = vadd.f32 %v1119, %v1294
    %v1296 = vpop.f32.mrb[0].mxu0
    %1297 = vmatprep.mubr.bf16.mxu0 %v1079
    %1298 = vmatmul.mubr.bf16.gmra.mrb[0].mxu0 %v1078
    %v1299 = vpop.f32.mrb[0].mxu0
    %v1300 = vadd.f32 %v1119, %v1299
    %v1301 = vpop.f32.mrb[0].mxu0
    %v1302 = vpop.f32.mrb[0].mxu0
    %v1303 = vadd.f32 %v1119, %v1302
    %v1304 = vpop.f32.mrb[0].mxu0
    %1305 = vmatprep.mubr.bf16.mxu0 %v1081
    %1306 = vmatmul.mubr.bf16.gmra.mrb[0].mxu0 %v1080
    %v1307 = vpop.f32.mrb[0].mxu0
    %v1308 = vadd.f32 %v1119, %v1307
    %v1309 = vpop.f32.mrb[0].mxu0
    %v1310 = vpop.f32.mrb[0].mxu0
    %v1311 = vadd.f32 %v1119, %v1310
    %v1312 = vpop.f32.mrb[0].mxu0
    %1313 = vdwg.mxu0
    %vm1314 = vcmask 31744
    %1315 = vst.msk [vmem:[%s9] sm:$0xff] %vm1314, %v1252
    %1316 = vst.msk [vmem:[%s9 + $0x8] sm:$0xff] %vm1314, %v1255
    %1317 = vst.msk [vmem:[%s9 + $0x10] sm:$0xff] %vm1314, %v1260
    %1318 = vst.msk [vmem:[%s9 + $0x18] sm:$0xff] %vm1314, %v1263
    %1319 = vst.msk [vmem:[%s9 + $0x20] sm:$0xff] %vm1314, %v1268
    %1320 = vst.msk [vmem:[%s9 + $0x28] sm:$0xff] %vm1314, %v1271
    %1321 = vst.msk [vmem:[%s9 + $0x30] sm:$0xff] %vm1314, %v1276
    %1322 = vst.msk [vmem:[%s9 + $0x38] sm:$0xff] %vm1314, %v1279
    %1323 = vst.msk [vmem:[%s9 + $0x40] sm:$0xff] %vm1314, %v1284
    %1324 = vst.msk [vmem:[%s9 + $0x48] sm:$0xff] %vm1314, %v1287
    %1325 = vst.msk [vmem:[%s9 + $0x50] sm:$0xff] %vm1314, %v1292
    %1326 = vst.msk [vmem:[%s9 + $0x58] sm:$0xff] %vm1314, %v1295
    %1327 = vst.msk [vmem:[%s9 + $0x60] sm:$0xff] %vm1314, %v1300
    %1328 = vst.msk [vmem:[%s9 + $0x68] sm:$0xff] %vm1314, %v1303
    %1329 = vst.msk [vmem:[%s9 + $0x70] sm:$0xff] %vm1314, %v1308
    %1330 = vst.msk [vmem:[%s9 + $0x78] sm:$0xff] %vm1314, %v1311
    // Predicated region
    $region46: #{tpu_custom_call.1} parent=1 // pred_check
      _
    $region47: #{tpu_custom_call.1} parent=1 // pred_check_branch
      %1332 = sbr.rel (0) target = $region49
    $region48: #{tpu_custom_call.1} parent=1 // pred_region
      _
    $region49: #{tpu_custom_call.1} parent=1 // pred_fallthru
      _
    // Predicated region
    $region50: #{tpu_custom_call.1} parent=1 // pred_check
      _
    $region51: #{tpu_custom_call.1} parent=1 // pred_check_branch
      %1334 = sbr.rel (0) target = $region53
    $region52: #{tpu_custom_call.1} parent=1 // pred_region
      _
    $region53: #{tpu_custom_call.1} parent=1 // pred_fallthru
      _
    %1335 = vsyncpa [#allocation3], 1
    %1336 = vsyncpa [#allocation5], 1

</llo_original>
